<compile_context>
chip_gen: v6e
topology: v6e:2x2x1
jax: 0.10.0
libtpu: 0.0.40
codegen_flags: <defaults>
</compile_context>

<pallas_src>
import jax
import jax.numpy as jnp
from jax import lax
from jax.experimental import pallas as pl
from jax.experimental.pallas import tpu as pltpu

_EPS = 1e-8          # PyTorch F.cosine_similarity default eps
_LANE = 128          # TPU lane width
_MAX_TILE = 2048     # cap on the spatial (lane) tile


def _cosine_sim_kernel(x1_ref, x2_ref, o_ref):
    """Per-tile cosine similarity, reducing over the channel axis.

    x1_ref, x2_ref: (N, C, TILE) VMEM tiles
    o_ref:          (N, TILE)    VMEM tile
    """
    x1 = x1_ref[...].astype(jnp.float32)
    x2 = x2_ref[...].astype(jnp.float32)
    w12 = jnp.sum(x1 * x2, axis=1)          # (N, TILE)
    w1 = jnp.sum(x1 * x1, axis=1)
    w2 = jnp.sum(x2 * x2, axis=1)
    # Per-norm clamp (matches torch: x / max(||x||, eps)); rsqrt goes to the EUP
    # slot, keeping the epilogue off the VALU/divide path, and avoids overflow
    # of the w1*w2 product.
    inv1 = lax.rsqrt(jnp.maximum(w1, _EPS * _EPS))
    inv2 = lax.rsqrt(jnp.maximum(w2, _EPS * _EPS))
    o_ref[...] = (w12 * inv1 * inv2).astype(o_ref.dtype)


def _physical_vmem_bytes():
    try:
        return int(pltpu.get_tpu_info().vmem_capacity_bytes)
    except Exception:
        return 64 * 1024 * 1024   # conservative fallback (v7x per-TC VMEM)


def _select_tile(N, C, HW, vmem_budget):
    """Pick the spatial lane-tile: as big as the VMEM budget allows, multiple of
    128, but keeping >=4 grid steps when the array is big enough (pipelining /
    megacore sharding)."""
    hw_rounded = pl.cdiv(HW, _LANE) * _LANE
    # Bytes per lane of tile held in VMEM: 2 inputs x 2 pipeline buffers x N*C
    # elements + 2 output buffers x N elements, all f32.
    per_lane = (2 * 2 * N * C + 2 * N) * 4
    tile = (max(vmem_budget // per_lane, _LANE) // _LANE) * _LANE
    tile = max(_LANE, min(tile, _MAX_TILE, hw_rounded))
    # Prefer a few grid steps so double-buffering / both TCs stay busy.
    while tile > _LANE and pl.cdiv(HW, tile) < 4:
        tile = max(_LANE, ((tile // 2) // _LANE) * _LANE)
    return tile


def feature_extractor_forward(image1, image2):
    """Exact equivalent of Feature_Extractor.forward(image1, image2)."""
    assert image1.shape == image2.shape, "inputs must have identical shapes"
    N, C, H, W = image1.shape
    HW = H * W

    x1 = image1.reshape(N, C, HW)
    x2 = image2.reshape(N, C, HW)

    phys_vmem = _physical_vmem_bytes()
    tile = _select_tile(N, C, HW, phys_vmem // 3)
    grid = (pl.cdiv(HW, tile),)

    # VMEM actually needed (double-buffered inputs + double-buffered output).
    footprint = (2 * 2 * N * C + 2 * N) * tile * 4
    vmem_limit = min(max(footprint + (16 << 20), 32 << 20), int(phys_vmem * 0.9))

    cost = pl.CostEstimate(
        flops=6 * N * C * HW,
        transcendentals=2 * N * HW,
        bytes_accessed=2 * N * C * HW * 4 + N * HW * 4,
    )

    out = pl.pallas_call(
        _cosine_sim_kernel,
        out_shape=jax.ShapeDtypeStruct((N, HW), jnp.float32),
        grid_spec=pltpu.PrefetchScalarGridSpec(
            num_scalar_prefetch=0,
            grid=grid,
            in_specs=[
                pl.BlockSpec((N, C, tile), lambda s: (0, 0, s)),
                pl.BlockSpec((N, C, tile), lambda s: (0, 0, s)),
            ],
            out_specs=pl.BlockSpec((N, tile), lambda s: (0, s)),
        ),
        compiler_params=pltpu.CompilerParams(
            dimension_semantics=("parallel",),
            vmem_limit_bytes=vmem_limit,
        ),
        cost_estimate=cost,
    )(x1, x2)

    return out.reshape(N, H, W)


def _reference(image1, image2):
    """Plain-JAX reference of F.cosine_similarity(image1, image2, dim=1)."""
    x1 = image1.astype(jnp.float32)
    x2 = image2.astype(jnp.float32)
    w12 = jnp.sum(x1 * x2, axis=1)
    w1 = jnp.sum(x1 * x1, axis=1)
    w2 = jnp.sum(x2 * x2, axis=1)
    n1 = jnp.maximum(jnp.sqrt(w1), _EPS)
    n2 = jnp.maximum(jnp.sqrt(w2), _EPS)
    return w12 / (n1 * n2)


if __name__ == "__main__":
    key = jax.random.PRNGKey(0)
    k1, k2 = jax.random.split(key)
    # Small NCHW images consistent with the module's (image1, image2) signature.
    image1 = jax.random.normal(k1, (2, 4, 16, 16), dtype=jnp.float32)
    image2 = jax.random.normal(k2, (2, 4, 16, 16), dtype=jnp.float32)

    sim = feature_extractor_forward(image1, image2)
    sim = jax.block_until_ready(sim)

    ref = _reference(image1, image2)
    assert sim.shape == (2, 16, 16)
    assert jnp.allclose(sim, ref, atol=1e-5, rtol=1e-5)

    print("KERNEL_OK")
</pallas_src>

<mosaic_0001>
module attributes {stable_mosaic.version = 11 : i64} {
  func.func @_cosine_sim_kernel(%arg0: i32, %arg1: memref<2x4x128xf32, #tpu.memory_space<vmem>>, %arg2: memref<2x4x128xf32, #tpu.memory_space<vmem>>, %arg3: memref<2x128xf32, #tpu.memory_space<vmem>>) attributes {dimension_semantics = [#tpu.dimension_semantics<parallel>], iteration_bounds = array<i64: 2>, scalar_prefetch = 0 : i64, scratch_operands = 0 : i64, tpu.core_type = #tpu.core_type<tc>, window_params = [{transform_indices = @transform_0, window_bounds = array<i64: 2, 4, 128>}, {transform_indices = @transform_1, window_bounds = array<i64: 2, 4, 128>}, {transform_indices = @transform_2, window_bounds = array<i64: 2, 128>}]} {
    %c0 = arith.constant 0 : index
    %c0_0 = arith.constant 0 : index
    %c0_1 = arith.constant 0 : index
    %0 = vector.load %arg1[%c0, %c0_0, %c0_1] : memref<2x4x128xf32, #tpu.memory_space<vmem>>, vector<2x4x128xf32>
    %c0_2 = arith.constant 0 : index
    %c0_3 = arith.constant 0 : index
    %c0_4 = arith.constant 0 : index
    %1 = vector.load %arg2[%c0_2, %c0_3, %c0_4] : memref<2x4x128xf32, #tpu.memory_space<vmem>>, vector<2x4x128xf32>
    %2 = arith.mulf %0, %1 : vector<2x4x128xf32>
    %cst = arith.constant dense<0.000000e+00> : vector<2x128xf32>
    %3 = vector.multi_reduction <add>, %2, %cst [1] : vector<2x4x128xf32> to vector<2x128xf32>
    %4 = arith.mulf %0, %0 : vector<2x4x128xf32>
    %cst_5 = arith.constant dense<0.000000e+00> : vector<2x128xf32>
    %5 = vector.multi_reduction <add>, %4, %cst_5 [1] : vector<2x4x128xf32> to vector<2x128xf32>
    %6 = arith.mulf %1, %1 : vector<2x4x128xf32>
    %cst_6 = arith.constant dense<0.000000e+00> : vector<2x128xf32>
    %7 = vector.multi_reduction <add>, %6, %cst_6 [1] : vector<2x4x128xf32> to vector<2x128xf32>
    %cst_7 = arith.constant 1.000000e-16 : f32
    %8 = vector.broadcast %cst_7 : f32 to vector<2x128xf32>
    %9 = arith.maximumf %5, %8 : vector<2x128xf32>
    %10 = math.rsqrt %9 : vector<2x128xf32>
    %cst_8 = arith.constant 1.000000e-16 : f32
    %11 = vector.broadcast %cst_8 : f32 to vector<2x128xf32>
    %12 = arith.maximumf %7, %11 : vector<2x128xf32>
    %13 = math.rsqrt %12 : vector<2x128xf32>
    %14 = arith.mulf %3, %10 : vector<2x128xf32>
    %15 = arith.mulf %14, %13 : vector<2x128xf32>
    %c0_9 = arith.constant 0 : index
    %c0_10 = arith.constant 0 : index
    %16 = vector.load %arg3[%c0_9, %c0_10] : memref<2x128xf32, #tpu.memory_space<vmem>>, vector<2x128xf32>
    tpu.vector_store %arg3[%c0_9, %c0_10], %15 {strides = array<i32>} : memref<2x128xf32, #tpu.memory_space<vmem>>, vector<2x128xf32>,
    return
  }
  func.func @transform_0(%arg0: i32) -> (i32, i32, i32) {
    %c0_i32 = arith.constant 0 : i32
    %c0_i32_0 = arith.constant 0 : i32
    %c0_i32_1 = arith.constant 0 : i32
    return %c0_i32, %c0_i32_0, %arg0 : i32, i32, i32
  }
  func.func @transform_1(%arg0: i32) -> (i32, i32, i32) {
    %c0_i32 = arith.constant 0 : i32
    %c0_i32_0 = arith.constant 0 : i32
    %c0_i32_1 = arith.constant 0 : i32
    return %c0_i32, %c0_i32_0, %arg0 : i32, i32, i32
  }
  func.func @transform_2(%arg0: i32) -> (i32, i32) {
    %c0_i32 = arith.constant 0 : i32
    %c0_i32_0 = arith.constant 0 : i32
    return %c0_i32, %arg0 : i32, i32
  }
}

</mosaic_0001>

<llo_original>
// kernel: tpu_custom_call.1
$region0: #{tpu_custom_call.1}
  #allocation0 [shape = 'u32[]', space=smem, size = 0x4, offset = 0x4, fixed_abs, tag = 'smem constant byte address 0x4 - core index']
  #allocation1 [shape = 'u32[144,128]{1,0:T(1,128)}', space=vmem, size = 0x12000, scoped, tag = 'internal scratch']
  %s0 = inlined_call_operand.hbm [shape: f32[2,4,256], index: 0, kind: input, shape index: {}]
  %s1 = inlined_call_operand.hbm [shape: f32[2,4,256], index: 1, kind: input, shape index: {}]
  %s2 = inlined_call_operand.hbm [shape: f32[2,256], index: 2, kind: output, shape index: {}]
  %s3 = sld [smem:[#allocation0]]
  $region49: #{tpu_custom_call.1} parent=0
    _
  %s5 = ssub.s32 1, %s3
  %s6 = scalar_select 0, %s5, %s3
  $region1: #{tpu_custom_call.1} parent=0
    #allocation2 [shape = 'u8[8192]{0}', space=vmem, size = 0x2000, scoped, tag = 'input window, operand 0']
    #allocation3 [shape = 's32[2]{0}', space=sflag, size = 0x8, scoped, tag = 'scoped memory for tpu_custom_call.1']
    #allocation4 [shape = 's32[2]{0}', space=sflag, size = 0x8, scoped, tag = 'scoped memory for tpu_custom_call.1']
    #allocation5 [shape = 'u8[8192]{0}', space=vmem, size = 0x2000, scoped, tag = 'input window, operand 1']
    #allocation6 [shape = 's32[2]{0}', space=sflag, size = 0x8, scoped, tag = 'scoped memory for tpu_custom_call.1']
    #allocation7 [shape = 'u8[2048]{0}', space=vmem, size = 0x800, scoped, tag = 'output window, operand 0']
    %7 = vsyncpa [#allocation3], 0
    %s8 = scalar_lea.sflag [#allocation3], 1
    %9 = vsyncpa %s8, 0
    %10 = vsyncpa [#allocation6], 0
    %s11 = scalar_lea.sflag [#allocation6], 1
    %12 = vsyncpa %s11, 0
    %13 = vsyncpa [#allocation4], 0
    %s14 = scalar_lea.sflag [#allocation4], 1
    %15 = vsyncpa %s14, 0
    loop: start=0, step=1, limit=4
    $region2: #{tpu_custom_call.1} parent=1 // loop_pre_header
      _
    $region3: #{tpu_custom_call.1} parent=1 // loop_header
      %s17 = sphi 0, %s21
      %p18 = scmp.ge.s32.totalorder %s17, 4
      %s27 = sphi 0, %s29
      %s30 = sphi 0, %s27
      %s31 = sphi 0, %s30
      %s47 = sphi 0, %s31
      %s53 = sphi 0, %s55
      %s56 = sphi 0, %s53
      %s57 = sphi 0, %s56
      %s73 = sphi 0, %s57
      %s79 = sphi 0, %s81
      %s82 = sphi 0, %s79
      %s83 = sphi 0, %s82
      %s99 = sphi 0, %s83
    $region4: #{tpu_custom_call.1} parent=1 // loop_header_branch
      %20 = sbr.rel (%p18) target = $region8
    $region5: #{tpu_custom_call.1} parent=1 // loop_body
      %s22 = ssub.s32 %s17, 1
      %s23 = ssub.s32 %s17, 2
      %s24 = sadd.s32 %s17, 1
      %s25 = ssub.s32 %s17, %s24
      %p26 = scmp.eq.s32.totalorder %s25, 0
      %s28 = sadd.s32 %s27, 1
      %s29 = scalar_select %p26, %s27, %s28
      %p32 = pneg %p26
      %p33 = scmp.eq.s32.totalorder %s17, 1
      %p34 = por %p32, %p33
      %p35 = scmp.ne.s32.totalorder %s27, %s30
      %p36 = scmp.eq.s32.totalorder %s17, 0
      %p37 = por %p35, %p36
      %p38 = scmp.ne.s32.totalorder %s27, %s30
      %p39 = scmp.eq.s32.totalorder %s22, 1
      %p40 = por %p38, %p39
      %p41 = scmp.ne.s32.totalorder %s30, %s31
      %p42 = scmp.eq.s32.totalorder %s22, 0
      %p43 = por %p41, %p42
      %p44 = scmp.ne.s32.totalorder %s30, %s31
      %p45 = scmp.eq.s32.totalorder %s23, 1
      %p46 = por %p44, %p45
      %p48 = scmp.ne.s32.totalorder %s31, %s47
      %p49 = scmp.eq.s32.totalorder %s23, 0
      %p50 = por %p48, %p49
      %s51 = ssub.s32 %s17, %s24
      %p52 = scmp.eq.s32.totalorder %s51, 0
      %s54 = sadd.s32 %s53, 1
      %s55 = scalar_select %p52, %s53, %s54
      %p58 = pneg %p52
      %p59 = scmp.eq.s32.totalorder %s17, 1
      %p60 = por %p58, %p59
      %p61 = scmp.ne.s32.totalorder %s53, %s56
      %p62 = scmp.eq.s32.totalorder %s17, 0
      %p63 = por %p61, %p62
      %p64 = scmp.ne.s32.totalorder %s53, %s56
      %p65 = scmp.eq.s32.totalorder %s22, 1
      %p66 = por %p64, %p65
      %p67 = scmp.ne.s32.totalorder %s56, %s57
      %p68 = scmp.eq.s32.totalorder %s22, 0
      %p69 = por %p67, %p68
      %p70 = scmp.ne.s32.totalorder %s56, %s57
      %p71 = scmp.eq.s32.totalorder %s23, 1
      %p72 = por %p70, %p71
      %p74 = scmp.ne.s32.totalorder %s57, %s73
      %p75 = scmp.eq.s32.totalorder %s23, 0
      %p76 = por %p74, %p75
      %s77 = ssub.s32 %s17, %s24
      %p78 = scmp.eq.s32.totalorder %s77, 0
      %s80 = sadd.s32 %s79, 1
      %s81 = scalar_select %p78, %s79, %s80
      %p84 = pneg %p78
      %p85 = scmp.eq.s32.totalorder %s17, 1
      %p86 = por %p84, %p85
      %p87 = scmp.ne.s32.totalorder %s79, %s82
      %p88 = scmp.eq.s32.totalorder %s17, 0
      %p89 = por %p87, %p88
      %p90 = scmp.ne.s32.totalorder %s79, %s82
      %p91 = scmp.eq.s32.totalorder %s22, 1
      %p92 = por %p90, %p91
      %p93 = scmp.ne.s32.totalorder %s82, %s83
      %p94 = scmp.eq.s32.totalorder %s22, 0
      %p95 = por %p93, %p94
      %p96 = scmp.ne.s32.totalorder %s82, %s83
      %p97 = scmp.eq.s32.totalorder %s23, 1
      %p98 = por %p96, %p97
      %p100 = scmp.ne.s32.totalorder %s83, %s99
      %p101 = scmp.eq.s32.totalorder %s23, 0
      %p102 = por %p100, %p101
      %p103 = scmp.le.s32.totalorder 1, %s17
      %p104 = scmp.lt.s32.totalorder %s17, 3
      %p105 = pnand %p103, %p104
      %p106 = pneg %p105
      // Predicated region
      $region9: #{tpu_custom_call.1} parent=5 // pred_check
        _
      $region10: #{tpu_custom_call.1} parent=5 // pred_check_branch
        %108 = sbr.rel (%p105) target = $region12
      $region11: #{tpu_custom_call.1} parent=5 // pred_region
        %s109 = ssub.s32 %s17, 1
      $region12: #{tpu_custom_call.1} parent=5 // pred_fallthru
        _
      %p110 = scmp.lt.s32.totalorder %s17, 2
      // Predicated region
      $region13: #{tpu_custom_call.1} parent=5 // pred_check
        %p111 = pneg %p110
      $region14: #{tpu_custom_call.1} parent=5 // pred_check_branch
        %113 = sbr.rel (%p111) target = $region16
      $region15: #{tpu_custom_call.1} parent=5 // pred_region
        // Predicated region
        $region17: #{tpu_custom_call.1} parent=15 // pred_check
          %p114 = pneg %p37
        $region18: #{tpu_custom_call.1} parent=15 // pred_check_branch
          %116 = sbr.rel (%p114) target = $region20
        $region19: #{tpu_custom_call.1} parent=15 // pred_region
          %s117 = sand.u32 %s27, 1
          %s118 = scalar_lea.sflag [#allocation3], %s117
          %s119 = sand.u32 %s27, 1
          %s120 = smul.addr %s119, 8
          %s121 = scalar_lea.vmem [#allocation2], %s120
          %s123 = ssub.s32 128, 128
          %124 = vsyncadd %s118, %s123
          %s125 = smul.addr %s17, 64
          %s126 = scalar_lea.hbm %s0, %s125
          %s127 = sshll.u32 %s121, 4
          %s128 = int_to_ptr.vmem [resolvable:$true] %s127
          %133 = dma.hbm_to_vmem [thread:$0]  %s126, 128, %s128, %s118, 128, 64, 4
        $region20: #{tpu_custom_call.1} parent=15 // pred_fallthru
          _
        // Predicated region
        $region21: #{tpu_custom_call.1} parent=15 // pred_check
          %p134 = pneg %p63
        $region22: #{tpu_custom_call.1} parent=15 // pred_check_branch
          %136 = sbr.rel (%p134) target = $region24
        $region23: #{tpu_custom_call.1} parent=15 // pred_region
          %s137 = sand.u32 %s53, 1
          %s138 = scalar_lea.sflag [#allocation6], %s137
          %s139 = sand.u32 %s53, 1
          %s140 = smul.addr %s139, 8
          %s141 = scalar_lea.vmem [#allocation5], %s140
          %s143 = ssub.s32 128, 128
          %144 = vsyncadd %s138, %s143
          %s145 = smul.addr %s17, 64
          %s146 = scalar_lea.hbm %s1, %s145
          %s147 = sshll.u32 %s141, 4
          %s148 = int_to_ptr.vmem [resolvable:$true] %s147
          %153 = dma.hbm_to_vmem [thread:$0]  %s146, 128, %s148, %s138, 128, 64, 4
        $region24: #{tpu_custom_call.1} parent=15 // pred_fallthru
          _
      $region16: #{tpu_custom_call.1} parent=5 // pred_fallthru
        _
      %p154 = scmp.le.s32.totalorder 1, %s17
      %p155 = scmp.lt.s32.totalorder %s17, 3
      %p156 = pnand %p154, %p155
      %p157 = pneg %p156
      // Predicated region
      $region25: #{tpu_custom_call.1} parent=5 // pred_check
        _
      $region26: #{tpu_custom_call.1} parent=5 // pred_check_branch
        %159 = sbr.rel (%p156) target = $region28
      $region27: #{tpu_custom_call.1} parent=5 // pred_region
        %s160 = ssub.s32 %s17, 1
        %s161 = sand.u32 %s30, 1
        %s162 = scalar_lea.sflag [#allocation3], %s161
        %s163 = sand.u32 %s30, 1
        %s164 = smul.addr %s163, 8
        %s165 = scalar_lea.vmem [#allocation2], %s164
        // Predicated region
        $region29: #{tpu_custom_call.1} parent=27 // pred_check
          %p166 = pneg %p43
        $region30: #{tpu_custom_call.1} parent=27 // pred_check_branch
          %168 = sbr.rel (%p166) target = $region32
        $region31: #{tpu_custom_call.1} parent=27 // pred_region
          %169 = dma.done %s162, 128
        $region32: #{tpu_custom_call.1} parent=27 // pred_fallthru
          _
        %s170 = sand.u32 %s56, 1
        %s171 = scalar_lea.sflag [#allocation6], %s170
        %s172 = sand.u32 %s56, 1
        %s173 = smul.addr %s172, 8
        %s174 = scalar_lea.vmem [#allocation5], %s173
        // Predicated region
        $region33: #{tpu_custom_call.1} parent=27 // pred_check
          %p175 = pneg %p69
        $region34: #{tpu_custom_call.1} parent=27 // pred_check_branch
          %177 = sbr.rel (%p175) target = $region36
        $region35: #{tpu_custom_call.1} parent=27 // pred_region
          %178 = dma.done %s171, 128
        $region36: #{tpu_custom_call.1} parent=27 // pred_fallthru
          _
        %s179 = sand.u32 %s30, 1
        %s180 = scalar_lea.sflag [#allocation3], %s179
        %s181 = sand.u32 %s30, 1
        %s182 = smul.addr %s181, 8
        %s183 = scalar_lea.vmem [#allocation2], %s182
        %p184 = pneg %p43
        %p185 = pneg %p40
        %s186 = sand.u32 %s56, 1
        %s187 = scalar_lea.sflag [#allocation6], %s186
        %s188 = sand.u32 %s56, 1
        %s189 = smul.addr %s188, 8
        %s190 = scalar_lea.vmem [#allocation5], %s189
        %p191 = pneg %p69
        %p192 = pneg %p66
        %p193 = pneg %p95
        %p194 = pneg %p92
        %s195 = sand.u32 %s82, 1
        %s196 = scalar_lea.sflag [#allocation4], %s195
        %s197 = sand.u32 %s82, 1
        %s198 = smul.addr %s197, 2
        %s199 = scalar_lea.vmem [#allocation7], %s198
        %v200 = vld [vmem:[%s165] sm:$0xf]
        %v201 = vld [vmem:[%s165 + $0x4] sm:$0xf]
        %v202 = vld [vmem:[%s174] sm:$0xf]
        %v203 = vld [vmem:[%s174 + $0x4] sm:$0xf]
        %v204 = vmul.f32 %v200, %v202
        %v205 = vmul.f32 %v201, %v203
        %vm206 = vcmask 1043456
        %v207 = vsel %vm206, %v204, 0.0
        %v208 = vrot.slane %v207, 4
        %v209 = vadd.f32 %v207, %v208
        %v210 = vrot.slane %v209, 2
        %v211 = vadd.f32 %v209, %v210
        %v212 = vrot.slane %v211, 1
        %v213 = vadd.f32 %v211, %v212
        %v214 = vsel %vm206, %v205, 0.0
        %v215 = vrot.slane %v214, 4
        %v216 = vadd.f32 %v214, %v215
        %v217 = vrot.slane %v216, 2
        %v218 = vadd.f32 %v216, %v217
        %v219 = vrot.slane %v218, 1
        %v220 = vadd.f32 %v218, %v219
        %v221 = vmul.f32 %v200, %v200
        %v222 = vmul.f32 %v201, %v201
        %v223 = vsel %vm206, %v221, 0.0
        %v224 = vrot.slane %v223, 4
        %v225 = vadd.f32 %v223, %v224
        %v226 = vrot.slane %v225, 2
        %v227 = vadd.f32 %v225, %v226
        %v228 = vrot.slane %v227, 1
        %v229 = vadd.f32 %v227, %v228
        %v230 = vsel %vm206, %v222, 0.0
        %v231 = vrot.slane %v230, 4
        %v232 = vadd.f32 %v230, %v231
        %v233 = vrot.slane %v232, 2
        %v234 = vadd.f32 %v232, %v233
        %v235 = vrot.slane %v234, 1
        %v236 = vadd.f32 %v234, %v235
        %v237 = vmul.f32 %v202, %v202
        %v238 = vmul.f32 %v203, %v203
        %v239 = vsel %vm206, %v237, 0.0
        %v240 = vrot.slane %v239, 4
        %v241 = vadd.f32 %v239, %v240
        %v242 = vrot.slane %v241, 2
        %v243 = vadd.f32 %v241, %v242
        %v244 = vrot.slane %v243, 1
        %v245 = vadd.f32 %v243, %v244
        %v246 = vsel %vm206, %v238, 0.0
        %v247 = vrot.slane %v246, 4
        %v248 = vadd.f32 %v246, %v247
        %v249 = vrot.slane %v248, 2
        %v250 = vadd.f32 %v248, %v249
        %v251 = vrot.slane %v250, 1
        %v252 = vadd.f32 %v250, %v251
        %v253 = vmax.f32 %v229, 1e-16
        %v254 = vmax.f32 %v236, 1e-16
        %v255 = vrsqrt.pop %v253
        %v256 = vrsqrt.pop %v254
        %v257 = vmax.f32 %v245, 1e-16
        %v258 = vmax.f32 %v252, 1e-16
        %v259 = vrsqrt.pop %v257
        %v260 = vrsqrt.pop %v258
        %v261 = vmul.f32 %v213, %v255
        %v262 = vmul.f32 %v220, %v256
        %v263 = vmul.f32 %v261, %v259
        %v264 = vmul.f32 %v262, %v260
        %vm267 = vcmask 1041409
        %v268 = vsel %vm267, %v264, %v263
        %270 = vst [vmem:[%s199] sm:$0x3] %v268
        %s271 = sand.u32 %s82, 1
        %s272 = scalar_lea.sflag [#allocation4], %s271
        %s273 = sand.u32 %s82, 1
        %s274 = smul.addr %s273, 2
        %s275 = scalar_lea.vmem [#allocation7], %s274
        // Predicated region
        $region37: #{tpu_custom_call.1} parent=27 // pred_check
          %p276 = pneg %p92
        $region38: #{tpu_custom_call.1} parent=27 // pred_check_branch
          %278 = sbr.rel (%p276) target = $region40
        $region39: #{tpu_custom_call.1} parent=27 // pred_region
          %s280 = ssub.s32 32, 32
          %281 = vsyncadd %s272, %s280
          %s282 = smul.addr %s22, 32
          %s283 = scalar_lea.hbm %s2, %s282
          %s285 = sshll.u32 %s275, 4
          %s286 = int_to_ptr.vmem [resolvable:$true] %s285
          %288 = dma.vmem_to_hbm [thread:$0]  %s286, 32, %s283, %s272
        $region40: #{tpu_custom_call.1} parent=27 // pred_fallthru
          _
      $region28: #{tpu_custom_call.1} parent=5 // pred_fallthru
        _
      %p289 = scmp.le.s32.totalorder 2, %s17
      // Predicated region
      $region41: #{tpu_custom_call.1} parent=5 // pred_check
        %p290 = pneg %p289
      $region42: #{tpu_custom_call.1} parent=5 // pred_check_branch
        %292 = sbr.rel (%p290) target = $region44
      $region43: #{tpu_custom_call.1} parent=5 // pred_region
        %s293 = ssub.s32 %s17, 2
        // Predicated region
        $region45: #{tpu_custom_call.1} parent=43 // pred_check
          %p294 = pneg %p98
        $region46: #{tpu_custom_call.1} parent=43 // pred_check_branch
          %296 = sbr.rel (%p294) target = $region48
        $region47: #{tpu_custom_call.1} parent=43 // pred_region
          %s297 = sand.u32 %s83, 1
          %s298 = scalar_lea.sflag [#allocation4], %s297
          %s299 = sand.u32 %s83, 1
          %s300 = smul.addr %s299, 2
          %s301 = scalar_lea.vmem [#allocation7], %s300
          %302 = dma.done %s298, 32
        $region48: #{tpu_custom_call.1} parent=43 // pred_fallthru
          _
      $region44: #{tpu_custom_call.1} parent=5 // pred_fallthru
        _
    $region6: #{tpu_custom_call.1} parent=1 // loop_footer
      %s21 = sadd.s32 1, %s17
    $region7: #{tpu_custom_call.1} parent=1 // loop_footer_branch
      %16 = sbr.rel target = $region3
    $region8: #{tpu_custom_call.1} parent=1 // loop_exit
      _
    %303 = vsyncpa [#allocation3], 1
    %s304 = scalar_lea.sflag [#allocation3], 1
    %305 = vsyncpa %s304, 1
    %306 = vsyncpa [#allocation6], 1
    %s307 = scalar_lea.sflag [#allocation6], 1
    %308 = vsyncpa %s307, 1
    %309 = vsyncpa [#allocation4], 1
    %s310 = scalar_lea.sflag [#allocation4], 1
    %311 = vsyncpa %s310, 1

</llo_original>
